<compile_context>
chip_gen: v5e
topology: v5e:2x2
jax: 0.10.0
libtpu: 0.0.40
codegen_flags: <defaults>
</compile_context>

<pallas_src>
import jax
import jax.numpy as jnp
from jax.experimental import pallas as pl
from jax.experimental.pallas import tpu as pltpu

_LANE = 128
_WIDTHS = (4096, 2048, 1024, 512, 256, 128)  # preferred lane-dense slab widths


def _silu_kernel(x_ref, o_ref):
    # SiLU / swish: x * sigmoid(x). sigmoid -> EUP transcendental, mul -> VPU.
    x = x_ref[...].astype(jnp.float32)
    o_ref[...] = (x * jax.nn.sigmoid(x)).astype(o_ref.dtype)


def _round_down(v: int, m: int) -> int:
    return (v // m) * m


def silu(x: jax.Array) -> jax.Array:
    """Elementwise SiLU; same shape/dtype as input (NCHW or any layout)."""
    orig_shape = x.shape
    dtype = x.dtype
    n = x.size
    if n == 0:
        return x

    flat = x.reshape(-1)

    # Pick the widest lane-dense width that divides the element count so no
    # pad/unpad copies are needed.
    width = next((w for w in _WIDTHS if n % w == 0), None)
    padded = 0
    if width is None:
        # Fallback (rare): pad only up to the next multiple of 128 lanes.
        # TODO(synk): this path still costs one extra HBM round trip for the
        # concatenate/slice; only taken when n is not a multiple of 128.
        width = _LANE
        padded = (-n) % _LANE
        flat = jnp.concatenate([flat, jnp.zeros((padded,), dtype=dtype)])
    rows = flat.size // width
    x2d = flat.reshape(rows, width)

    itemsize = jnp.dtype(dtype).itemsize
    # Sublane granularity: 8 for 4-byte dtypes, 16 for bf16, 32 for 1-byte.
    sub = max(8, 32 // itemsize)

    # Per-generation block-size target: ~2 MiB (v5e/v6e), ~4 MiB on v7x where
    # HBM is ~3.2 TB/s and per-step overhead would otherwise dominate.
    try:
        kind = jax.devices()[0].device_kind.lower()
    except Exception:  # pragma: no cover - defensive
        kind = ""
    target_bytes = (4 << 20) if ("v7" in kind or "7x" in kind) else (2 << 20)

    if rows < sub:
        block_rows = rows  # block dim == full array dim (exempt from sub rule)
    else:
        block_rows = max(sub, _round_down(target_bytes // (width * itemsize), sub))
        block_rows = min(block_rows, _round_down(rows, sub))

    grid = (pl.cdiv(rows, block_rows),)  # ragged last block -> masked stores

    out2d = pl.pallas_call(
        _silu_kernel,
        out_shape=jax.ShapeDtypeStruct((rows, width), dtype),
        grid_spec=pltpu.PrefetchScalarGridSpec(
            num_scalar_prefetch=0,
            grid=grid,
            in_specs=[pl.BlockSpec((block_rows, width), lambda i: (i, 0))],
            out_specs=pl.BlockSpec((block_rows, width), lambda i: (i, 0)),
        ),
        compiler_params=pltpu.CompilerParams(
            # 1-D parallel grid: megacore-shards across TCs on v7x.
            dimension_semantics=("parallel",),
            # 2 input + 2 output double buffers of <= 4 MiB each -> <= 16 MiB,
            # under every generation's physical VMEM; raise the scoped limit
            # explicitly so v5e's 16 MiB default never forces smaller tiles.
            vmem_limit_bytes=32 * 1024 * 1024,
        ),
    )(x2d)

    out_flat = out2d.reshape(-1)
    if padded:
        out_flat = out_flat[:n]
    return out_flat.reshape(orig_shape)


if __name__ == "__main__":
    key = jax.random.PRNGKey(0)
    # NCHW input, as the PyTorch module would receive from a conv stack.
    x = jax.random.normal(key, (2, 4, 16, 16), dtype=jnp.float32)

    y = jax.block_until_ready(silu(x))

    # Reference check in plain JAX.
    y_ref = x * jax.nn.sigmoid(x)
    assert y.shape == x.shape and y.dtype == x.dtype
    assert jnp.allclose(y, y_ref, atol=1e-6, rtol=1e-6)

    print("KERNEL_OK")
</pallas_src>

<mosaic_0001>
module attributes {stable_mosaic.version = 11 : i64} {
  func.func @_silu_kernel(%arg0: i32, %arg1: memref<1x2048xf32, #tpu.memory_space<vmem>>, %arg2: memref<1x2048xf32, #tpu.memory_space<vmem>>) attributes {dimension_semantics = [#tpu.dimension_semantics<parallel>], iteration_bounds = array<i64: 1>, scalar_prefetch = 0 : i64, scratch_operands = 0 : i64, tpu.core_type = #tpu.core_type<tc>, window_params = [{transform_indices = @transform_0, window_bounds = array<i64: 1, 2048>}, {transform_indices = @transform_1, window_bounds = array<i64: 1, 2048>}]} {
    %c0 = arith.constant 0 : index
    %c0_0 = arith.constant 0 : index
    %0 = vector.load %arg1[%c0, %c0_0] : memref<1x2048xf32, #tpu.memory_space<vmem>>, vector<1x2048xf32>
    %1 = arith.negf %0 : vector<1x2048xf32>
    %2 = math.exp %1 : vector<1x2048xf32>
    %cst = arith.constant 1.000000e+00 : f32
    %3 = vector.broadcast %cst : f32 to vector<1x2048xf32>
    %4 = arith.addf %3, %2 : vector<1x2048xf32>
    %5 = arith.divf %3, %4 : vector<1x2048xf32>
    %6 = arith.mulf %0, %5 : vector<1x2048xf32>
    %c0_1 = arith.constant 0 : index
    %c0_2 = arith.constant 0 : index
    %7 = vector.load %arg2[%c0_1, %c0_2] : memref<1x2048xf32, #tpu.memory_space<vmem>>, vector<1x2048xf32>
    tpu.vector_store %arg2[%c0_1, %c0_2], %6 {strides = array<i32>} : memref<1x2048xf32, #tpu.memory_space<vmem>>, vector<1x2048xf32>,
    return
  }
  func.func @transform_0(%arg0: i32) -> (i32, i32) {
    %c0_i32 = arith.constant 0 : i32
    %c0_i32_0 = arith.constant 0 : i32
    return %arg0, %c0_i32 : i32, i32
  }
  func.func @transform_1(%arg0: i32) -> (i32, i32) {
    %c0_i32 = arith.constant 0 : i32
    %c0_i32_0 = arith.constant 0 : i32
    return %arg0, %c0_i32 : i32, i32
  }
}

</mosaic_0001>

<llo_original>
// kernel: tpu_custom_call.1
$region0: #{tpu_custom_call.1}
  #allocation0 [shape = 'u32[]', space=smem, size = 0x4, offset = 0x4, fixed_abs, tag = 'smem constant byte address 0x4 - core index']
  #allocation1 [shape = 'u32[72,128]{1,0:T(1,128)}', space=vmem, size = 0x9000, scoped, tag = 'internal scratch']
  %s0 = inlined_call_operand.hbm [shape: f32[1,2048], index: 0, kind: input, shape index: {}]
  %s1 = inlined_call_operand.hbm [shape: f32[1,2048], index: 1, kind: output, shape index: {}]
  %s2 = sld [smem:[#allocation0]]
  $region18: #{tpu_custom_call.1} parent=0
    _
  %s4 = ssub.s32 1, %s2
  %s5 = scalar_select 0, %s4, %s2
  $region1: #{tpu_custom_call.1} parent=0
    #allocation2 [shape = 'u8[8192]{0}', space=vmem, size = 0x2000, scoped, tag = 'input window, operand 0, single buffered']
    #allocation3 [shape = 's32[1]{0}', space=sflag, size = 0x4, scoped, tag = 'scoped memory for tpu_custom_call.1']
    #allocation4 [shape = 's32[1]{0}', space=sflag, size = 0x4, scoped, tag = 'scoped memory for tpu_custom_call.1']
    #allocation5 [shape = 'u8[8192]{0}', space=vmem, size = 0x2000, scoped, tag = 'output window, operand 0, single buffered']
    %6 = vsyncpa [#allocation3], 0
    %7 = vsyncpa [#allocation4], 0
    // Predicated region
    $region2: #{tpu_custom_call.1} parent=1 // pred_check
      _
    $region3: #{tpu_custom_call.1} parent=1 // pred_check_branch
      %9 = sbr.rel (0) target = $region5
    $region4: #{tpu_custom_call.1} parent=1 // pred_region
      %11 = vsyncadd [#allocation3], 0
      %s13 = sshll.u32 %s0, 4
      %s14 = int_to_ptr.hbm [resolvable:$true] %s13
      %s15 = sshll.u32 [#allocation2], 4
      %s16 = int_to_ptr.vmem [resolvable:$true] %s15
      %18 = dma.hbm_to_vmem [thread:$0]  %s14, 256, %s16, [#allocation3]
    $region5: #{tpu_custom_call.1} parent=1 // pred_fallthru
      _
    // Predicated region
    $region6: #{tpu_custom_call.1} parent=1 // pred_check
      _
    $region7: #{tpu_custom_call.1} parent=1 // pred_check_branch
      %20 = sbr.rel (0) target = $region9
    $region8: #{tpu_custom_call.1} parent=1 // pred_region
      %22 = dma.done [#allocation3], 256
    $region9: #{tpu_custom_call.1} parent=1 // pred_fallthru
      _
    %v23 = vld [vmem:[#allocation2] sm:$0xff]
    %v24 = vld [vmem:[#allocation2 + $0x8] sm:$0xff]
    %v25 = vxor.u32 %v23, 2147483648
    %v26 = vxor.u32 %v24, 2147483648
    %v27 = vmul.f32 %v25, 1.442695
    %v28 = vpow.pop %v27
    %v29 = vmul.f32 %v26, 1.442695
    %v30 = vpow.pop %v29
    %v31 = vadd.f32 %v28, 1.0
    %v32 = vadd.f32 %v30, 1.0
    %v33 = vrcp.pop %v31
    %v34 = vmul.f32 %v31, %v33
    %v35 = vsub.f32 1.0, %v34
    %v36 = vmul.f32 %v33, %v35
    %v37 = vadd.f32 %v33, %v36
    %vm38 = vweird.f32 %v31
    %vm39 = vweird.f32 %v33
    %vm40 = vmor %vm38, %vm39
    %v41 = vsel %vm40, %v33, %v37
    %v42 = vand.u32 2147483647, %v31
    %vm43 = vcmp.eq.f32.partialorder %v42, 8.507059e+37
    %v44 = vand.u32 %v31, 2147483648
    %v45 = vor.u32 1.1754944e-38, %v44
    %v46 = vsel %vm43, %v45, %v41
    %v47 = vmul.f32 1.0, %v46
    %v48 = vrcp.pop %v32
    %v49 = vmul.f32 %v32, %v48
    %v50 = vsub.f32 1.0, %v49
    %v51 = vmul.f32 %v48, %v50
    %v52 = vadd.f32 %v48, %v51
    %vm53 = vweird.f32 %v32
    %vm54 = vweird.f32 %v48
    %vm55 = vmor %vm53, %vm54
    %v56 = vsel %vm55, %v48, %v52
    %v57 = vand.u32 2147483647, %v32
    %vm58 = vcmp.eq.f32.partialorder %v57, 8.507059e+37
    %v59 = vand.u32 %v32, 2147483648
    %v60 = vor.u32 1.1754944e-38, %v59
    %v61 = vsel %vm58, %v60, %v56
    %v62 = vmul.f32 1.0, %v61
    %v63 = vmul.f32 %v23, %v47
    %v64 = vmul.f32 %v24, %v62
    %65 = vst [vmem:[#allocation5] sm:$0xff] %v63
    %66 = vst [vmem:[#allocation5 + $0x8] sm:$0xff] %v64
    // Predicated region
    $region10: #{tpu_custom_call.1} parent=1 // pred_check
      _
    $region11: #{tpu_custom_call.1} parent=1 // pred_check_branch
      %68 = sbr.rel (0) target = $region13
    $region12: #{tpu_custom_call.1} parent=1 // pred_region
      %70 = vsyncadd [#allocation4], 0
      %s72 = sshll.u32 [#allocation5], 4
      %s73 = int_to_ptr.vmem [resolvable:$true] %s72
      %s74 = sshll.u32 %s1, 4
      %s75 = int_to_ptr.hbm [resolvable:$true] %s74
      %77 = dma.vmem_to_hbm [thread:$0]  %s73, 256, %s75, [#allocation4]
    $region13: #{tpu_custom_call.1} parent=1 // pred_fallthru
      _
    // Predicated region
    $region14: #{tpu_custom_call.1} parent=1 // pred_check
      _
    $region15: #{tpu_custom_call.1} parent=1 // pred_check_branch
      %79 = sbr.rel (0) target = $region17
    $region16: #{tpu_custom_call.1} parent=1 // pred_region
      %81 = dma.done [#allocation4], 256
    $region17: #{tpu_custom_call.1} parent=1 // pred_fallthru
      _
    %82 = vsyncpa [#allocation3], 1
    %83 = vsyncpa [#allocation4], 1

</llo_original>
